<compile_context>
chip_gen: v6e
topology: v6e:2x2x1
jax: 0.10.0
libtpu: 0.0.40
codegen_flags: <defaults>
</compile_context>

<pallas_src>
import math

import jax
import jax.numpy as jnp
from jax.experimental import pallas as pl
from jax.experimental.pallas import tpu as pltpu

PAD = 128          # lane-aligned feature width for all padded dims
HIDDEN = 64        # true hidden width of the Actor MLP


def _round_up(n, m):
    return ((n + m - 1) // m) * m


def _default_matmul_dtype():
    """bf16 MXU inputs on v6e / v7x, f32 elsewhere (v5e and older)."""
    try:
        kind = jax.devices()[0].device_kind.lower()
    except Exception:
        return jnp.float32
    if any(tag in kind for tag in ("v6", "v7", "7x")):
        return jnp.bfloat16
    return jnp.float32


# ---------------------------------------------------------------------------
# Kernel: one batch tile of the 3-layer MLP (tanh, tanh, linear head).
# x_ref:    (TB, PAD)      f32
# w_ref:    (3, PAD, PAD)  f32 or bf16 (resident across grid iterations)
# b_ref:    (3, 1, PAD)    f32
# mean_ref: (TB, PAD)      f32  (only the first num_outputs lanes are real)
# ---------------------------------------------------------------------------
def actor_kernel(x_ref, w_ref, b_ref, mean_ref):
    mdt = w_ref.dtype
    x = x_ref[...].astype(mdt)

    h1 = jnp.tanh(
        jnp.dot(x, w_ref[0], preferred_element_type=jnp.float32) + b_ref[0]
    )
    h2 = jnp.tanh(
        jnp.dot(h1.astype(mdt), w_ref[1], preferred_element_type=jnp.float32)
        + b_ref[1]
    )
    mean_ref[...] = (
        jnp.dot(h2.astype(mdt), w_ref[2], preferred_element_type=jnp.float32)
        + b_ref[2]
    )


def actor_forward(x, params, *, block_b=256, matmul_dtype=None):
    """Actor.forward: returns (action_mean, action_log_std, action_std)."""
    w_stack = params["w_stack"]          # (3, PAD, PAD) f32
    b_stack = params["b_stack"]          # (3, 1, PAD)   f32
    log_std = params["log_std"]          # (1, num_outputs) f32
    d_in = params["num_inputs"]
    d_out = params["num_outputs"]
    pad = w_stack.shape[-1]

    if matmul_dtype is None:
        matmul_dtype = _default_matmul_dtype()

    B = x.shape[0]
    tb = min(block_b, _round_up(max(B, 1), 8))   # batch tile (multiple of 8)
    Bp = _round_up(B, tb)                        # padded batch
    grid = (Bp // tb,)

    # Zero-pad batch and input features into a lane-dense (Bp, PAD) slab.
    x_pad = jnp.zeros((Bp, pad), jnp.float32).at[:B, :d_in].set(
        x.astype(jnp.float32)
    )
    # Cast weights once (outside the per-tile loop) for the MXU.
    w_k = w_stack.astype(matmul_dtype)

    itemsize = 4 if matmul_dtype == jnp.float32 else 2
    cost = pl.CostEstimate(
        flops=2 * Bp * pad * pad * 3,
        transcendentals=2 * Bp * pad,
        bytes_accessed=(Bp * pad * 4 * 2          # x in + mean out (f32)
                        + 3 * pad * pad * itemsize
                        + 3 * pad * 4),
    )

    mean_pad = pl.pallas_call(
        actor_kernel,
        out_shape=jax.ShapeDtypeStruct((Bp, pad), jnp.float32),
        grid_spec=pltpu.PrefetchScalarGridSpec(
            num_scalar_prefetch=0,
            grid=grid,
            in_specs=[
                pl.BlockSpec((tb, pad), lambda i: (i, 0)),
                # Weights / biases: index_map always block 0 -> stay resident
                # in VMEM across all batch-tile iterations.
                pl.BlockSpec((3, pad, pad), lambda i: (0, 0, 0)),
                pl.BlockSpec((3, 1, pad), lambda i: (0, 0, 0)),
            ],
            out_specs=pl.BlockSpec((tb, pad), lambda i: (i, 0)),
        ),
        compiler_params=pltpu.CompilerParams(
            dimension_semantics=("parallel",),
        ),
        cost_estimate=cost,
    )(x_pad, w_k, b_stack)

    action_mean = mean_pad[:B, :d_out]
    # action_log_std.expand_as(action_mean) and exp: x-independent, done
    # outside the kernel (no B*A writeback / EUP work inside).
    action_log_std = jnp.broadcast_to(log_std, action_mean.shape)
    action_std = jnp.exp(action_log_std)
    return action_mean, action_log_std, action_std


def init_actor_params(key, num_inputs, num_outputs, hidden=HIDDEN, pad=PAD):
    """PyTorch nn.Linear default init + Actor.__init__ rescaling
    (action_mean.weight *= 0.1, action_mean.bias = 0), stored zero-padded to
    lane-aligned (pad x pad) stacks so the kernel sees dense 128-wide tiles."""
    k1, k2, k3, k4, k5, k6 = jax.random.split(key, 6)

    def linear_init(kw, kb, fan_in, fan_out):
        bound = 1.0 / math.sqrt(fan_in)
        # stored transposed vs PyTorch: (fan_in, fan_out), kernel does x @ W
        w = jax.random.uniform(kw, (fan_in, fan_out), jnp.float32, -bound, bound)
        b = jax.random.uniform(kb, (fan_out,), jnp.float32, -bound, bound)
        return w, b

    w1, b1 = linear_init(k1, k2, num_inputs, hidden)
    w2, b2 = linear_init(k3, k4, hidden, hidden)
    w3, b3 = linear_init(k5, k6, hidden, num_outputs)
    w3 = w3 * 0.1                      # self.action_mean.weight.data.mul_(0.1)
    b3 = b3 * 0.0                      # self.action_mean.bias.data.mul_(0.0)

    w_stack = jnp.zeros((3, pad, pad), jnp.float32)
    w_stack = w_stack.at[0, :num_inputs, :hidden].set(w1)
    w_stack = w_stack.at[1, :hidden, :hidden].set(w2)
    w_stack = w_stack.at[2, :hidden, :num_outputs].set(w3)

    b_stack = jnp.zeros((3, 1, pad), jnp.float32)
    b_stack = b_stack.at[0, 0, :hidden].set(b1)
    b_stack = b_stack.at[1, 0, :hidden].set(b2)
    b_stack = b_stack.at[2, 0, :num_outputs].set(b3)

    log_std = jnp.zeros((1, num_outputs), jnp.float32)   # nn.Parameter(zeros)

    return dict(
        w_stack=w_stack,
        b_stack=b_stack,
        log_std=log_std,
        num_inputs=num_inputs,
        num_outputs=num_outputs,
        hidden=hidden,
    )


def actor_forward_ref(x, params):
    """Plain-JAX reference on the UNPADDED weights (checks padding math)."""
    d_in, d_out, h = params["num_inputs"], params["num_outputs"], params["hidden"]
    w_stack, b_stack = params["w_stack"], params["b_stack"]
    w1, b1 = w_stack[0, :d_in, :h], b_stack[0, 0, :h]
    w2, b2 = w_stack[1, :h, :h], b_stack[1, 0, :h]
    w3, b3 = w_stack[2, :h, :d_out], b_stack[2, 0, :d_out]
    h1 = jnp.tanh(x @ w1 + b1)
    h2 = jnp.tanh(h1 @ w2 + b2)
    mean = h2 @ w3 + b3
    ls = jnp.broadcast_to(params["log_std"], mean.shape)
    return mean, ls, jnp.exp(ls)


if __name__ == "__main__":
    # Hopper-v2: observation dim = 11, action dim = 3.
    NUM_INPUTS = 11
    NUM_OUTPUTS = 3
    BATCH = 16

    key = jax.random.PRNGKey(0)
    k_params, k_x = jax.random.split(key)
    params = init_actor_params(k_params, NUM_INPUTS, NUM_OUTPUTS)
    x = jax.random.normal(k_x, (BATCH, NUM_INPUTS), jnp.float32)

    mean, log_std, std = jax.block_until_ready(actor_forward(x, params))

    mean_r, log_std_r, std_r = actor_forward_ref(x, params)

    # Looser tolerance when the MXU path runs bf16 inputs (v6e / v7x).
    tol = 3e-2 if _default_matmul_dtype() == jnp.bfloat16 else 1e-5
    assert mean.shape == (BATCH, NUM_OUTPUTS)
    assert jnp.allclose(mean, mean_r, atol=tol, rtol=tol), "action_mean mismatch"
    assert jnp.allclose(log_std, log_std_r, atol=1e-6), "action_log_std mismatch"
    assert jnp.allclose(std, std_r, atol=1e-6), "action_std mismatch"

    print("KERNEL_OK")
</pallas_src>

<mosaic_0001>
module attributes {stable_mosaic.version = 11 : i64} {
  func.func @actor_kernel(%arg0: i32, %arg1: memref<16x128xf32, #tpu.memory_space<vmem>>, %arg2: memref<3x128x128xf32, #tpu.memory_space<vmem>>, %arg3: memref<3x1x128xf32, #tpu.memory_space<vmem>>, %arg4: memref<16x128xf32, #tpu.memory_space<vmem>>) attributes {dimension_semantics = [#tpu.dimension_semantics<parallel>], iteration_bounds = array<i64: 1>, scalar_prefetch = 0 : i64, scratch_operands = 0 : i64, tpu.core_type = #tpu.core_type<tc>, window_params = [{transform_indices = @transform_0, window_bounds = array<i64: 16, 128>}, {pipeline_mode = #tpu.pipeline_mode<synchronous>, transform_indices = @transform_1, window_bounds = array<i64: 3, 128, 128>}, {pipeline_mode = #tpu.pipeline_mode<synchronous>, transform_indices = @transform_2, window_bounds = array<i64: 3, 1, 128>}, {transform_indices = @transform_3, window_bounds = array<i64: 16, 128>}]} {
    %c0 = arith.constant 0 : index
    %c0_0 = arith.constant 0 : index
    %0 = vector.load %arg1[%c0, %c0_0] : memref<16x128xf32, #tpu.memory_space<vmem>>, vector<16x128xf32>
    %c0_1 = arith.constant 0 : index
    %c0_2 = arith.constant 0 : index
    %c0_3 = arith.constant 0 : index
    %1 = vector.load %arg2[%c0_1, %c0_2, %c0_3] : memref<3x128x128xf32, #tpu.memory_space<vmem>>, vector<1x128x128xf32>
    %2 = vector.shape_cast %1 : vector<1x128x128xf32> to vector<128x128xf32>
    %cst = arith.constant dense<0.000000e+00> : vector<16x128xf32>
    %3 = tpu.matmul %0, %2, %cst {dimension_numbers = #tpu.dot_dimension_numbers<[1], [0], [0], [1], [0, 0, 1, 1], [], []>} : vector<16x128xf32>, vector<128x128xf32>, vector<16x128xf32> -> vector<16x128xf32>
    %c0_4 = arith.constant 0 : index
    %c0_5 = arith.constant 0 : index
    %c0_6 = arith.constant 0 : index
    %4 = vector.load %arg3[%c0_4, %c0_5, %c0_6] : memref<3x1x128xf32, #tpu.memory_space<vmem>>, vector<1x1x128xf32>
    %5 = vector.shape_cast %4 : vector<1x1x128xf32> to vector<1x128xf32>
    %6 = vector.broadcast %5 : vector<1x128xf32> to vector<16x128xf32>
    %7 = arith.addf %3, %6 : vector<16x128xf32>
    %8 = math.tanh %7 : vector<16x128xf32>
    %c1 = arith.constant 1 : index
    %c0_7 = arith.constant 0 : index
    %c0_8 = arith.constant 0 : index
    %9 = vector.load %arg2[%c1, %c0_7, %c0_8] : memref<3x128x128xf32, #tpu.memory_space<vmem>>, vector<1x128x128xf32>
    %10 = vector.shape_cast %9 : vector<1x128x128xf32> to vector<128x128xf32>
    %cst_9 = arith.constant dense<0.000000e+00> : vector<16x128xf32>
    %11 = tpu.matmul %8, %10, %cst_9 {dimension_numbers = #tpu.dot_dimension_numbers<[1], [0], [0], [1], [0, 0, 1, 1], [], []>} : vector<16x128xf32>, vector<128x128xf32>, vector<16x128xf32> -> vector<16x128xf32>
    %c1_10 = arith.constant 1 : index
    %c0_11 = arith.constant 0 : index
    %c0_12 = arith.constant 0 : index
    %12 = vector.load %arg3[%c1_10, %c0_11, %c0_12] : memref<3x1x128xf32, #tpu.memory_space<vmem>>, vector<1x1x128xf32>
    %13 = vector.shape_cast %12 : vector<1x1x128xf32> to vector<1x128xf32>
    %14 = vector.broadcast %13 : vector<1x128xf32> to vector<16x128xf32>
    %15 = arith.addf %11, %14 : vector<16x128xf32>
    %16 = math.tanh %15 : vector<16x128xf32>
    %c2 = arith.constant 2 : index
    %c0_13 = arith.constant 0 : index
    %c0_14 = arith.constant 0 : index
    %17 = vector.load %arg2[%c2, %c0_13, %c0_14] : memref<3x128x128xf32, #tpu.memory_space<vmem>>, vector<1x128x128xf32>
    %18 = vector.shape_cast %17 : vector<1x128x128xf32> to vector<128x128xf32>
    %cst_15 = arith.constant dense<0.000000e+00> : vector<16x128xf32>
    %19 = tpu.matmul %16, %18, %cst_15 {dimension_numbers = #tpu.dot_dimension_numbers<[1], [0], [0], [1], [0, 0, 1, 1], [], []>} : vector<16x128xf32>, vector<128x128xf32>, vector<16x128xf32> -> vector<16x128xf32>
    %c2_16 = arith.constant 2 : index
    %c0_17 = arith.constant 0 : index
    %c0_18 = arith.constant 0 : index
    %20 = vector.load %arg3[%c2_16, %c0_17, %c0_18] : memref<3x1x128xf32, #tpu.memory_space<vmem>>, vector<1x1x128xf32>
    %21 = vector.shape_cast %20 : vector<1x1x128xf32> to vector<1x128xf32>
    %22 = vector.broadcast %21 : vector<1x128xf32> to vector<16x128xf32>
    %23 = arith.addf %19, %22 : vector<16x128xf32>
    %c0_19 = arith.constant 0 : index
    %c0_20 = arith.constant 0 : index
    %24 = vector.load %arg4[%c0_19, %c0_20] : memref<16x128xf32, #tpu.memory_space<vmem>>, vector<16x128xf32>
    tpu.vector_store %arg4[%c0_19, %c0_20], %23 {strides = array<i32>} : memref<16x128xf32, #tpu.memory_space<vmem>>, vector<16x128xf32>,
    return
  }
  func.func @transform_0(%arg0: i32) -> (i32, i32) {
    %c0_i32 = arith.constant 0 : i32
    %c0_i32_0 = arith.constant 0 : i32
    return %arg0, %c0_i32 : i32, i32
  }
  func.func @transform_1(%arg0: i32) -> (i32, i32, i32) {
    %c0_i32 = arith.constant 0 : i32
    %c0_i32_0 = arith.constant 0 : i32
    %c0_i32_1 = arith.constant 0 : i32
    %c0_i32_2 = arith.constant 0 : i32
    return %c0_i32, %c0_i32_0, %c0_i32_1 : i32, i32, i32
  }
  func.func @transform_2(%arg0: i32) -> (i32, i32, i32) {
    %c0_i32 = arith.constant 0 : i32
    %c0_i32_0 = arith.constant 0 : i32
    %c0_i32_1 = arith.constant 0 : i32
    %c0_i32_2 = arith.constant 0 : i32
    return %c0_i32, %c0_i32_0, %c0_i32_1 : i32, i32, i32
  }
  func.func @transform_3(%arg0: i32) -> (i32, i32) {
    %c0_i32 = arith.constant 0 : i32
    %c0_i32_0 = arith.constant 0 : i32
    return %arg0, %c0_i32 : i32, i32
  }
}

</mosaic_0001>

<llo_original>
// kernel: tpu_custom_call.1
$region0: #{tpu_custom_call.1}
  #allocation0 [shape = 'u32[]', space=smem, size = 0x4, offset = 0x4, fixed_abs, tag = 'smem constant byte address 0x4 - core index']
  #allocation1 [shape = 'u32[144,128]{1,0:T(1,128)}', space=vmem, size = 0x12000, scoped, tag = 'internal scratch']
  %s0 = inlined_call_operand.hbm [shape: f32[16,128], index: 0, kind: input, shape index: {}]
  %s1 = inlined_call_operand.hbm [shape: f32[3,128,128], index: 1, kind: input, shape index: {}]
  %s2 = inlined_call_operand.vmem [shape: f32[3,1,128], index: 2, kind: input, shape index: {}]
  %s3 = inlined_call_operand.hbm [shape: f32[16,128], index: 3, kind: output, shape index: {}]
  %s4 = sld [smem:[#allocation0]]
  $region30: #{tpu_custom_call.1} parent=0
    _
  %s6 = ssub.s32 1, %s4
  %s7 = scalar_select 0, %s6, %s4
  $region1: #{tpu_custom_call.1} parent=0
    #allocation2 [shape = 'u8[8192]{0}', space=vmem, size = 0x2000, scoped, tag = 'input window, operand 0, single buffered']
    #allocation3 [shape = 's32[1]{0}', space=sflag, size = 0x4, scoped, tag = 'scoped memory for tpu_custom_call.1']
    #allocation4 [shape = 's32[1]{0}', space=sflag, size = 0x4, scoped, tag = 'scoped memory for tpu_custom_call.1']
    #allocation5 [shape = 'u8[196608]{0}', space=vmem, size = 0x30000, scoped, tag = 'input window, operand 1, single buffered']
    #allocation6 [shape = 's32[1]{0}', space=sflag, size = 0x4, scoped, tag = 'scoped memory for tpu_custom_call.1']
    #allocation7 [shape = 'u8[8192]{0}', space=vmem, size = 0x2000, scoped, tag = 'output window, operand 0, single buffered']
    %8 = vsyncpa [#allocation3], 0
    %9 = vsyncpa [#allocation6], 0
    %10 = vsyncpa [#allocation4], 0
    // Predicated region
    $region2: #{tpu_custom_call.1} parent=1 // pred_check
      _
    $region3: #{tpu_custom_call.1} parent=1 // pred_check_branch
      %12 = sbr.rel (0) target = $region5
    $region4: #{tpu_custom_call.1} parent=1 // pred_region
      %s14 = ssub.s32 256, 256
      %15 = vsyncadd [#allocation3], %s14
      %s16 = sshll.u32 [#allocation2], 4
      %s17 = int_to_ptr.vmem [resolvable:$true] %s16
      %22 = dma.hbm_to_vmem [thread:$0]  %s0, 256, %s17, [#allocation3], 128, 128, 8
    $region5: #{tpu_custom_call.1} parent=1 // pred_fallthru
      _
    // Predicated region
    $region6: #{tpu_custom_call.1} parent=1 // pred_check
      _
    $region7: #{tpu_custom_call.1} parent=1 // pred_check_branch
      %24 = sbr.rel (0) target = $region9
    $region8: #{tpu_custom_call.1} parent=1 // pred_region
      %s26 = ssub.s32 6144, 6144
      %27 = vsyncadd [#allocation6], %s26
      %s28 = sshll.u32 [#allocation5], 4
      %s29 = int_to_ptr.vmem [resolvable:$true] %s28
      %34 = dma.hbm_to_vmem [thread:$0]  %s1, 6144, %s29, [#allocation6], 128, 128, 8
    $region9: #{tpu_custom_call.1} parent=1 // pred_fallthru
      _
    // Predicated region
    $region10: #{tpu_custom_call.1} parent=1 // pred_check
      _
    $region11: #{tpu_custom_call.1} parent=1 // pred_check_branch
      %36 = sbr.rel (0) target = $region13
    $region12: #{tpu_custom_call.1} parent=1 // pred_region
      _
    $region13: #{tpu_custom_call.1} parent=1 // pred_fallthru
      _
    // Predicated region
    $region14: #{tpu_custom_call.1} parent=1 // pred_check
      _
    $region15: #{tpu_custom_call.1} parent=1 // pred_check_branch
      %38 = sbr.rel (0) target = $region17
    $region16: #{tpu_custom_call.1} parent=1 // pred_region
      %39 = dma.done [#allocation3], 256
    $region17: #{tpu_custom_call.1} parent=1 // pred_fallthru
      _
    // Predicated region
    $region18: #{tpu_custom_call.1} parent=1 // pred_check
      _
    $region19: #{tpu_custom_call.1} parent=1 // pred_check_branch
      %41 = sbr.rel (0) target = $region21
    $region20: #{tpu_custom_call.1} parent=1 // pred_region
      %42 = dma.done [#allocation6], 6144
    $region21: #{tpu_custom_call.1} parent=1 // pred_fallthru
      _
    %v43 = vld [vmem:[#allocation2] sm:$0xff]
    %v44 = vld [vmem:[#allocation2 + $0x8] sm:$0xff]
    %v45 = vld [vmem:[#allocation5] sm:$0xff]
    %v46 = vld [vmem:[#allocation5 + $0x8] sm:$0xff]
    %v47 = vld [vmem:[#allocation5 + $0x10] sm:$0xff]
    %v48 = vld [vmem:[#allocation5 + $0x18] sm:$0xff]
    %v49 = vld [vmem:[#allocation5 + $0x20] sm:$0xff]
    %v50 = vld [vmem:[#allocation5 + $0x28] sm:$0xff]
    %v51 = vld [vmem:[#allocation5 + $0x30] sm:$0xff]
    %v52 = vld [vmem:[#allocation5 + $0x38] sm:$0xff]
    %v53 = vld [vmem:[#allocation5 + $0x40] sm:$0xff]
    %v54 = vld [vmem:[#allocation5 + $0x48] sm:$0xff]
    %v55 = vld [vmem:[#allocation5 + $0x50] sm:$0xff]
    %v56 = vld [vmem:[#allocation5 + $0x58] sm:$0xff]
    %v57 = vld [vmem:[#allocation5 + $0x60] sm:$0xff]
    %v58 = vld [vmem:[#allocation5 + $0x68] sm:$0xff]
    %v59 = vld [vmem:[#allocation5 + $0x70] sm:$0xff]
    %v60 = vld [vmem:[#allocation5 + $0x78] sm:$0xff]
    %v61 = vld [vmem:[%s2] sm:$0x1]
    %v63 = vlaneseq
    %v64 = vshrl.u32 %v63, 7
    %v65 = vsub.s32 0, %v64
    %v66 = vrot.slane %v61, %v65
    %68 = vmatprep.subr.mxu0 0.0
    %69 = vmatpush1.msra.mxu0 %v60
    %70 = vmatprep.subr.mxu0 0.0
    %71 = vmatpush1.msra.mxu0 %v59
    %72 = vmatprep.subr.mxu0 0.0
    %73 = vmatpush1.msra.mxu0 %v58
    %74 = vmatprep.subr.mxu0 0.0
    %75 = vmatpush1.msra.mxu0 %v57
    %76 = vmatprep.subr.mxu0 0.0
    %77 = vmatpush1.msra.mxu0 %v56
    %78 = vmatprep.subr.mxu0 0.0
    %79 = vmatpush1.msra.mxu0 %v55
    %80 = vmatprep.subr.mxu0 0.0
    %81 = vmatpush1.msra.mxu0 %v54
    %82 = vmatprep.subr.mxu0 0.0
    %83 = vmatpush1.msra.mxu0 %v53
    %84 = vmatprep.subr.mxu0 0.0
    %85 = vmatpush1.msra.mxu0 %v52
    %86 = vmatprep.subr.mxu0 0.0
    %87 = vmatpush1.msra.mxu0 %v51
    %88 = vmatprep.subr.mxu0 0.0
    %89 = vmatpush1.msra.mxu0 %v50
    %90 = vmatprep.subr.mxu0 0.0
    %91 = vmatpush1.msra.mxu0 %v49
    %92 = vmatprep.subr.mxu0 0.0
    %93 = vmatpush1.msra.mxu0 %v48
    %94 = vmatprep.subr.mxu0 0.0
    %95 = vmatpush1.msra.mxu0 %v47
    %96 = vmatprep.subr.mxu0 0.0
    %97 = vmatpush1.msra.mxu0 %v46
    %98 = vmatprep.subr.mxu0 0.0
    %99 = vmatpush1.msra.mxu0 %v45
    %100 = vmatprep.subr.mxu0 0.0
    %101 = vmatpush2.msra.mxu0 0.0
    %102 = vmatprep.subr.mxu0 0.0
    %103 = vmatpush2.msra.mxu0 0.0
    %104 = vmatprep.subr.mxu0 0.0
    %105 = vmatpush2.msra.mxu0 0.0
    %106 = vmatprep.subr.mxu0 0.0
    %107 = vmatpush2.msra.mxu0 0.0
    %108 = vmatprep.subr.mxu0 0.0
    %109 = vmatpush2.msra.mxu0 0.0
    %110 = vmatprep.subr.mxu0 0.0
    %111 = vmatpush2.msra.mxu0 0.0
    %112 = vmatprep.subr.mxu0 0.0
    %113 = vmatpush2.msra.mxu0 0.0
    %114 = vmatprep.subr.mxu0 0.0
    %115 = vmatpush2.msra.mxu0 0.0
    %116 = vmatprep.subr.mxu0 0.0
    %117 = vmatpush2.msra.mxu0 0.0
    %118 = vmatprep.subr.mxu0 0.0
    %119 = vmatpush2.msra.mxu0 0.0
    %120 = vmatprep.subr.mxu0 0.0
    %121 = vmatpush2.msra.mxu0 0.0
    %122 = vmatprep.subr.mxu0 0.0
    %123 = vmatpush2.msra.mxu0 0.0
    %124 = vmatprep.subr.mxu0 0.0
    %125 = vmatpush2.msra.mxu0 0.0
    %126 = vmatprep.subr.mxu0 0.0
    %127 = vmatpush2.msra.mxu0 0.0
    %128 = vmatprep.subr.mxu0 0.0
    %129 = vmatpush2.msra.mxu0 0.0
    %130 = vmatprep.subr.mxu0 0.0
    %131 = vmatpush2.msra.mxu0 0.0
    %132 = vmatprep.mubr.f32.mxu0 0.0
    %133 = vmatmul.mubr.f32.gmra.mxu0 %v43
    %v134 = vpop.f32.mrf.mxu0
    %v135 = vadd.f32 %v66, %v134
    %v136 = vpop.f32.mrf.mxu0
    %137 = vmatprep.mubr.f32.mxu0 0.0
    %138 = vmatmul.mubr.f32.gmra.mxu0 %v44
    %v139 = vpop.f32.mrf.mxu0
    %v140 = vadd.f32 %v66, %v139
    %v141 = vpop.f32.mrf.mxu0
    %142 = vdwg.mxu0
    %v143 = vtanh.pop %v135
    %v144 = vtanh.pop %v140
    %s145 = scalar_lea.vmem [#allocation5], 128
    %v146 = vld [vmem:[%s145] sm:$0xff]
    %v147 = vld [vmem:[%s145 + $0x8] sm:$0xff]
    %v148 = vld [vmem:[%s145 + $0x10] sm:$0xff]
    %v149 = vld [vmem:[%s145 + $0x18] sm:$0xff]
    %v150 = vld [vmem:[%s145 + $0x20] sm:$0xff]
    %v151 = vld [vmem:[%s145 + $0x28] sm:$0xff]
    %v152 = vld [vmem:[%s145 + $0x30] sm:$0xff]
    %v153 = vld [vmem:[%s145 + $0x38] sm:$0xff]
    %v154 = vld [vmem:[%s145 + $0x40] sm:$0xff]
    %v155 = vld [vmem:[%s145 + $0x48] sm:$0xff]
    %v156 = vld [vmem:[%s145 + $0x50] sm:$0xff]
    %v157 = vld [vmem:[%s145 + $0x58] sm:$0xff]
    %v158 = vld [vmem:[%s145 + $0x60] sm:$0xff]
    %v159 = vld [vmem:[%s145 + $0x68] sm:$0xff]
    %v160 = vld [vmem:[%s145 + $0x70] sm:$0xff]
    %v161 = vld [vmem:[%s145 + $0x78] sm:$0xff]
    %s162 = scalar_lea.vmem %s2, 1
    %v163 = vld [vmem:[%s162] sm:$0x1]
    %v165 = vlaneseq
    %v166 = vshrl.u32 %v165, 7
    %v167 = vsub.s32 0, %v166
    %v168 = vrot.slane %v163, %v167
    %170 = vmatprep.subr.mxu0 0.0
    %171 = vmatpush1.msra.mxu0 %v161
    %172 = vmatprep.subr.mxu0 0.0
    %173 = vmatpush1.msra.mxu0 %v160
    %174 = vmatprep.subr.mxu0 0.0
    %175 = vmatpush1.msra.mxu0 %v159
    %176 = vmatprep.subr.mxu0 0.0
    %177 = vmatpush1.msra.mxu0 %v158
    %178 = vmatprep.subr.mxu0 0.0
    %179 = vmatpush1.msra.mxu0 %v157
    %180 = vmatprep.subr.mxu0 0.0
    %181 = vmatpush1.msra.mxu0 %v156
    %182 = vmatprep.subr.mxu0 0.0
    %183 = vmatpush1.msra.mxu0 %v155
    %184 = vmatprep.subr.mxu0 0.0
    %185 = vmatpush1.msra.mxu0 %v154
    %186 = vmatprep.subr.mxu0 0.0
    %187 = vmatpush1.msra.mxu0 %v153
    %188 = vmatprep.subr.mxu0 0.0
    %189 = vmatpush1.msra.mxu0 %v152
    %190 = vmatprep.subr.mxu0 0.0
    %191 = vmatpush1.msra.mxu0 %v151
    %192 = vmatprep.subr.mxu0 0.0
    %193 = vmatpush1.msra.mxu0 %v150
    %194 = vmatprep.subr.mxu0 0.0
    %195 = vmatpush1.msra.mxu0 %v149
    %196 = vmatprep.subr.mxu0 0.0
    %197 = vmatpush1.msra.mxu0 %v148
    %198 = vmatprep.subr.mxu0 0.0
    %199 = vmatpush1.msra.mxu0 %v147
    %200 = vmatprep.subr.mxu0 0.0
    %201 = vmatpush1.msra.mxu0 %v146
    %202 = vmatprep.subr.mxu0 0.0
    %203 = vmatpush2.msra.mxu0 0.0
    %204 = vmatprep.subr.mxu0 0.0
    %205 = vmatpush2.msra.mxu0 0.0
    %206 = vmatprep.subr.mxu0 0.0
    %207 = vmatpush2.msra.mxu0 0.0
    %208 = vmatprep.subr.mxu0 0.0
    %209 = vmatpush2.msra.mxu0 0.0
    %210 = vmatprep.subr.mxu0 0.0
    %211 = vmatpush2.msra.mxu0 0.0
    %212 = vmatprep.subr.mxu0 0.0
    %213 = vmatpush2.msra.mxu0 0.0
    %214 = vmatprep.subr.mxu0 0.0
    %215 = vmatpush2.msra.mxu0 0.0
    %216 = vmatprep.subr.mxu0 0.0
    %217 = vmatpush2.msra.mxu0 0.0
    %218 = vmatprep.subr.mxu0 0.0
    %219 = vmatpush2.msra.mxu0 0.0
    %220 = vmatprep.subr.mxu0 0.0
    %221 = vmatpush2.msra.mxu0 0.0
    %222 = vmatprep.subr.mxu0 0.0
    %223 = vmatpush2.msra.mxu0 0.0
    %224 = vmatprep.subr.mxu0 0.0
    %225 = vmatpush2.msra.mxu0 0.0
    %226 = vmatprep.subr.mxu0 0.0
    %227 = vmatpush2.msra.mxu0 0.0
    %228 = vmatprep.subr.mxu0 0.0
    %229 = vmatpush2.msra.mxu0 0.0
    %230 = vmatprep.subr.mxu0 0.0
    %231 = vmatpush2.msra.mxu0 0.0
    %232 = vmatprep.subr.mxu0 0.0
    %233 = vmatpush2.msra.mxu0 0.0
    %234 = vmatprep.mubr.f32.mxu0 0.0
    %235 = vmatmul.mubr.f32.gmra.mxu0 %v143
    %v236 = vpop.f32.mrf.mxu0
    %v237 = vadd.f32 %v168, %v236
    %v238 = vpop.f32.mrf.mxu0
    %239 = vmatprep.mubr.f32.mxu0 0.0
    %240 = vmatmul.mubr.f32.gmra.mxu0 %v144
    %v241 = vpop.f32.mrf.mxu0
    %v242 = vadd.f32 %v168, %v241
    %v243 = vpop.f32.mrf.mxu0
    %244 = vdwg.mxu0
    %v245 = vtanh.pop %v237
    %v246 = vtanh.pop %v242
    %s247 = scalar_lea.vmem [#allocation5], 256
    %v248 = vld [vmem:[%s247] sm:$0xff]
    %v249 = vld [vmem:[%s247 + $0x8] sm:$0xff]
    %v250 = vld [vmem:[%s247 + $0x10] sm:$0xff]
    %v251 = vld [vmem:[%s247 + $0x18] sm:$0xff]
    %v252 = vld [vmem:[%s247 + $0x20] sm:$0xff]
    %v253 = vld [vmem:[%s247 + $0x28] sm:$0xff]
    %v254 = vld [vmem:[%s247 + $0x30] sm:$0xff]
    %v255 = vld [vmem:[%s247 + $0x38] sm:$0xff]
    %v256 = vld [vmem:[%s247 + $0x40] sm:$0xff]
    %v257 = vld [vmem:[%s247 + $0x48] sm:$0xff]
    %v258 = vld [vmem:[%s247 + $0x50] sm:$0xff]
    %v259 = vld [vmem:[%s247 + $0x58] sm:$0xff]
    %v260 = vld [vmem:[%s247 + $0x60] sm:$0xff]
    %v261 = vld [vmem:[%s247 + $0x68] sm:$0xff]
    %v262 = vld [vmem:[%s247 + $0x70] sm:$0xff]
    %v263 = vld [vmem:[%s247 + $0x78] sm:$0xff]
    %s264 = scalar_lea.vmem %s2, 2
    %v265 = vld [vmem:[%s264] sm:$0x1]
    %v267 = vlaneseq
    %v268 = vshrl.u32 %v267, 7
    %v269 = vsub.s32 0, %v268
    %v270 = vrot.slane %v265, %v269
    %272 = vmatprep.subr.mxu0 0.0
    %273 = vmatpush1.msra.mxu0 %v263
    %274 = vmatprep.subr.mxu0 0.0
    %275 = vmatpush1.msra.mxu0 %v262
    %276 = vmatprep.subr.mxu0 0.0
    %277 = vmatpush1.msra.mxu0 %v261
    %278 = vmatprep.subr.mxu0 0.0
    %279 = vmatpush1.msra.mxu0 %v260
    %280 = vmatprep.subr.mxu0 0.0
    %281 = vmatpush1.msra.mxu0 %v259
    %282 = vmatprep.subr.mxu0 0.0
    %283 = vmatpush1.msra.mxu0 %v258
    %284 = vmatprep.subr.mxu0 0.0
    %285 = vmatpush1.msra.mxu0 %v257
    %286 = vmatprep.subr.mxu0 0.0
    %287 = vmatpush1.msra.mxu0 %v256
    %288 = vmatprep.subr.mxu0 0.0
    %289 = vmatpush1.msra.mxu0 %v255
    %290 = vmatprep.subr.mxu0 0.0
    %291 = vmatpush1.msra.mxu0 %v254
    %292 = vmatprep.subr.mxu0 0.0
    %293 = vmatpush1.msra.mxu0 %v253
    %294 = vmatprep.subr.mxu0 0.0
    %295 = vmatpush1.msra.mxu0 %v252
    %296 = vmatprep.subr.mxu0 0.0
    %297 = vmatpush1.msra.mxu0 %v251
    %298 = vmatprep.subr.mxu0 0.0
    %299 = vmatpush1.msra.mxu0 %v250
    %300 = vmatprep.subr.mxu0 0.0
    %301 = vmatpush1.msra.mxu0 %v249
    %302 = vmatprep.subr.mxu0 0.0
    %303 = vmatpush1.msra.mxu0 %v248
    %304 = vmatprep.subr.mxu0 0.0
    %305 = vmatpush2.msra.mxu0 0.0
    %306 = vmatprep.subr.mxu0 0.0
    %307 = vmatpush2.msra.mxu0 0.0
    %308 = vmatprep.subr.mxu0 0.0
    %309 = vmatpush2.msra.mxu0 0.0
    %310 = vmatprep.subr.mxu0 0.0
    %311 = vmatpush2.msra.mxu0 0.0
    %312 = vmatprep.subr.mxu0 0.0
    %313 = vmatpush2.msra.mxu0 0.0
    %314 = vmatprep.subr.mxu0 0.0
    %315 = vmatpush2.msra.mxu0 0.0
    %316 = vmatprep.subr.mxu0 0.0
    %317 = vmatpush2.msra.mxu0 0.0
    %318 = vmatprep.subr.mxu0 0.0
    %319 = vmatpush2.msra.mxu0 0.0
    %320 = vmatprep.subr.mxu0 0.0
    %321 = vmatpush2.msra.mxu0 0.0
    %322 = vmatprep.subr.mxu0 0.0
    %323 = vmatpush2.msra.mxu0 0.0
    %324 = vmatprep.subr.mxu0 0.0
    %325 = vmatpush2.msra.mxu0 0.0
    %326 = vmatprep.subr.mxu0 0.0
    %327 = vmatpush2.msra.mxu0 0.0
    %328 = vmatprep.subr.mxu0 0.0
    %329 = vmatpush2.msra.mxu0 0.0
    %330 = vmatprep.subr.mxu0 0.0
    %331 = vmatpush2.msra.mxu0 0.0
    %332 = vmatprep.subr.mxu0 0.0
    %333 = vmatpush2.msra.mxu0 0.0
    %334 = vmatprep.subr.mxu0 0.0
    %335 = vmatpush2.msra.mxu0 0.0
    %336 = vmatprep.mubr.f32.mxu0 0.0
    %337 = vmatmul.mubr.f32.gmra.mxu0 %v245
    %v338 = vpop.f32.mrf.mxu0
    %v339 = vadd.f32 %v270, %v338
    %v340 = vpop.f32.mrf.mxu0
    %341 = vmatprep.mubr.f32.mxu0 0.0
    %342 = vmatmul.mubr.f32.gmra.mxu0 %v246
    %v343 = vpop.f32.mrf.mxu0
    %v344 = vadd.f32 %v270, %v343
    %v345 = vpop.f32.mrf.mxu0
    %346 = vdwg.mxu0
    %347 = vst [vmem:[#allocation7] sm:$0xff] %v339
    %348 = vst [vmem:[#allocation7 + $0x8] sm:$0xff] %v344
    // Predicated region
    $region22: #{tpu_custom_call.1} parent=1 // pred_check
      _
    $region23: #{tpu_custom_call.1} parent=1 // pred_check_branch
      %350 = sbr.rel (0) target = $region25
    $region24: #{tpu_custom_call.1} parent=1 // pred_region
      %s352 = ssub.s32 256, 256
      %353 = vsyncadd [#allocation4], %s352
      %s354 = sshll.u32 [#allocation7], 4
      %s355 = int_to_ptr.vmem [resolvable:$true] %s354
      %360 = dma.vmem_to_hbm [thread:$0]  %s355, 256, %s3, [#allocation4], 128, 128, 8
    $region25: #{tpu_custom_call.1} parent=1 // pred_fallthru
      _
    // Predicated region
    $region26: #{tpu_custom_call.1} parent=1 // pred_check
      _
    $region27: #{tpu_custom_call.1} parent=1 // pred_check_branch
      %362 = sbr.rel (0) target = $region29
    $region28: #{tpu_custom_call.1} parent=1 // pred_region
      %363 = dma.done [#allocation4], 256
    $region29: #{tpu_custom_call.1} parent=1 // pred_fallthru
      _
    %364 = vsyncpa [#allocation3], 1
    %365 = vsyncpa [#allocation6], 1
    %366 = vsyncpa [#allocation4], 1

</llo_original>
